<compile_context>
chip_gen: v5e
topology: v5e:2x2
jax: 0.10.0
libtpu: 0.0.40
codegen_flags: <defaults>
</compile_context>

<pallas_src>
import math

import jax
import jax.numpy as jnp
from jax.experimental import pallas as pl
from jax.experimental.pallas import tpu as pltpu


def _baseline_kernel(x_ref, w_ref, b_ref, o_ref):
    # x_ref: (tile_rows, k*H) native dtype; w_ref: (k*H, k); b_ref: (1, 1) f32.
    acc = jnp.dot(x_ref[...], w_ref[...], preferred_element_type=jnp.float32)
    o_ref[...] = (acc + b_ref[...]).astype(o_ref.dtype)


def _vmem_capacity_bytes(default=64 * 1024 * 1024):
    # Generation-aware budget: 128 MiB on v5e/v6e, 64 MiB per TC on v7x.
    # Fallback is the conservative v7x value.
    try:
        return int(pltpu.get_tpu_info().vmem_capacity_bytes)
    except Exception:
        return default


def baseline_forward(x, w, b, *, max_tile_bytes=None):
    """x: any shape whose squeeze() gives (B, H); w: (1, H); b: (1,). -> (B, 1)."""
    H = int(w.shape[-1])

    # ---- shape glue: matches torch x.squeeze() -------------------------------
    x2d = jnp.squeeze(x)
    if x2d.ndim == 1:
        # Single surviving axis: assume it is the feature axis (same assumption
        # torch's Linear makes).  Ambiguous only for the B>1, H==1 edge case.
        x2d = x2d[None, :]
    assert x2d.ndim == 2 and x2d.shape[-1] == H, (x2d.shape, H)
    B = int(x2d.shape[0])

    # ---- dtype handling -------------------------------------------------------
    if x2d.dtype in (jnp.bfloat16, jnp.float16):
        w_dtype = x2d.dtype          # MXU-native narrow matmul, f32 accumulation
    else:
        if x2d.dtype != jnp.float32:
            x2d = x2d.astype(jnp.float32)
        w_dtype = jnp.float32
    out_dtype = x2d.dtype
    itemsize = jnp.dtype(x2d.dtype).itemsize

    # ---- lane packing (small H) -----------------------------------------------
    # Pack k rows per lane row; k divides B so (B, H) -> (B//k, k*H) is a free
    # row-major re-view (no pad, no copy).
    k = math.gcd(max(1, 128 // H), B) if H < 128 else 1
    Bp = B // k
    W = k * H
    x_packed = x2d.reshape(Bp, W)

    # Block-diagonal weight: column j holds w for the j-th packed sample.
    w_col = w.reshape(H, 1).astype(jnp.float32)
    wbd = jnp.kron(jnp.eye(k, dtype=jnp.float32), w_col).astype(w_dtype)  # (W, k)
    b2d = b.reshape(1, 1).astype(jnp.float32)

    # ---- tile sizing (bytes, generation-aware) --------------------------------
    vmem_cap = _vmem_capacity_bytes()
    x_window = max(8 << 20, vmem_cap // 4)         # double-buffered x budget
    tile_bytes = min(16 << 20, x_window // 2)      # 8 MiB (v7x) / 16 MiB (v5e/v6e)
    if max_tile_bytes is not None:                 # test hook
        tile_bytes = min(tile_bytes, int(max_tile_bytes))
    row_bytes = W * itemsize
    tile_rows = max(8, (tile_bytes // row_bytes) // 8 * 8)
    if tile_rows >= Bp:
        tile_rows = Bp                             # one full-extent block
    # TODO(synk): for extremely large H (8 rows exceed the tile budget) split H
    # over a second "arbitrary" grid axis with an f32 accumulator.

    grid = (pl.cdiv(Bp, tile_rows),)               # ragged last block is masked

    need = (2 * tile_rows * row_bytes              # double-buffered x tiles
            + 2 * tile_rows * k * 4                # double-buffered out tiles
            + W * k * 4 + (1 << 16))               # weight + bias + slack
    vmem_limit = int(min(max(2 * need, 16 << 20), int(vmem_cap * 0.9)))

    out = pl.pallas_call(
        _baseline_kernel,
        out_shape=jax.ShapeDtypeStruct((Bp, k), out_dtype),
        grid=grid,
        in_specs=[
            pl.BlockSpec((tile_rows, W), lambda i: (i, 0)),   # x: batch-tiled
            pl.BlockSpec((W, k), lambda i: (0, 0)),           # weight: resident
            pl.BlockSpec((1, 1), lambda i: (0, 0)),           # bias: resident
        ],
        out_specs=pl.BlockSpec((tile_rows, k), lambda i: (i, 0)),
        compiler_params=pltpu.CompilerParams(
            dimension_semantics=("parallel",),     # shards batch tiles across TCs
            vmem_limit_bytes=vmem_limit,
        ),
    )(x_packed, wbd, b2d)

    return out.reshape(B, 1)


def init_baseline_params(hidden_dim, key):
    """Deterministic init matching nn.Linear's U(-1/sqrt(H), 1/sqrt(H))."""
    kw, kb = jax.random.split(key)
    bound = 1.0 / (hidden_dim ** 0.5)
    w = jax.random.uniform(kw, (1, hidden_dim), jnp.float32, -bound, bound)
    b = jax.random.uniform(kb, (1,), jnp.float32, -bound, bound)
    return w, b


if __name__ == "__main__":
    key = jax.random.PRNGKey(0)
    k_x, k_p = jax.random.split(key)

    batch, hidden_dim = 2, 32
    # Typical caller passes (B, 1, hidden_dim); squeeze() -> (B, hidden_dim).
    x = jax.random.normal(k_x, (batch, 1, hidden_dim), jnp.float32)
    w, b = init_baseline_params(hidden_dim, k_p)

    out = baseline_forward(x, w, b)
    jax.block_until_ready(out)
    ref = jnp.squeeze(x) @ w.T + b
    assert out.shape == (batch, 1), out.shape
    assert jnp.allclose(out, ref, atol=1e-5, rtol=1e-5)

    # Batch not divisible by the packing factor (k falls back to 1, ragged rows).
    x_odd = jax.random.normal(k_x, (37, 1, hidden_dim), jnp.float32)
    out_odd = baseline_forward(x_odd, w, b)
    jax.block_until_ready(out_odd)
    ref_odd = jnp.squeeze(x_odd) @ w.T + b
    assert out_odd.shape == (37, 1), out_odd.shape
    assert jnp.allclose(out_odd, ref_odd, atol=1e-5, rtol=1e-5)

    # Lane-packed path (k = 4 for H = 32), single full block.
    x_pack = jax.random.normal(k_x, (64, 1, hidden_dim), jnp.float32)
    out_pack = baseline_forward(x_pack, w, b)
    jax.block_until_ready(out_pack)
    ref_pack = jnp.squeeze(x_pack) @ w.T + b
    assert out_pack.shape == (64, 1), out_pack.shape
    assert jnp.allclose(out_pack, ref_pack, atol=1e-5, rtol=1e-5)

    # Multi-tile grid with a ragged trailing block (tiny tile forced for test).
    x_big = jax.random.normal(k_x, (100, 1, hidden_dim), jnp.float32)
    out_big = baseline_forward(x_big, w, b, max_tile_bytes=4096)
    jax.block_until_ready(out_big)
    ref_big = jnp.squeeze(x_big) @ w.T + b
    assert out_big.shape == (100, 1), out_big.shape
    assert jnp.allclose(out_big, ref_big, atol=1e-5, rtol=1e-5)

    print("KERNEL_OK")
</pallas_src>

<mosaic_0001>
module attributes {stable_mosaic.version = 11 : i64} {
  func.func @_baseline_kernel(%arg0: i32, %arg1: memref<1x64xf32, #tpu.memory_space<vmem>>, %arg2: memref<64x2xf32, #tpu.memory_space<vmem>>, %arg3: memref<1x1xf32, #tpu.memory_space<vmem>>, %arg4: memref<1x2xf32, #tpu.memory_space<vmem>>) attributes {dimension_semantics = [#tpu.dimension_semantics<parallel>], iteration_bounds = array<i64: 1>, scalar_prefetch = 0 : i64, scratch_operands = 0 : i64, tpu.core_type = #tpu.core_type<tc>, window_params = [{transform_indices = @transform_0, window_bounds = array<i64: 1, 64>}, {pipeline_mode = #tpu.pipeline_mode<synchronous>, transform_indices = @transform_1, window_bounds = array<i64: 64, 2>}, {pipeline_mode = #tpu.pipeline_mode<synchronous>, transform_indices = @transform_2, window_bounds = array<i64: 1, 1>}, {transform_indices = @transform_3, window_bounds = array<i64: 1, 2>}]} {
    %c0 = arith.constant 0 : index
    %c0_0 = arith.constant 0 : index
    %0 = vector.load %arg1[%c0, %c0_0] : memref<1x64xf32, #tpu.memory_space<vmem>>, vector<1x64xf32>
    %c0_1 = arith.constant 0 : index
    %c0_2 = arith.constant 0 : index
    %1 = vector.load %arg2[%c0_1, %c0_2] : memref<64x2xf32, #tpu.memory_space<vmem>>, vector<64x2xf32>
    %cst = arith.constant dense<0.000000e+00> : vector<1x2xf32>
    %2 = tpu.matmul %0, %1, %cst {dimension_numbers = #tpu.dot_dimension_numbers<[1], [0], [0], [1], [0, 0, 1, 1], [], []>} : vector<1x64xf32>, vector<64x2xf32>, vector<1x2xf32> -> vector<1x2xf32>
    %c0_3 = arith.constant 0 : index
    %c0_4 = arith.constant 0 : index
    %3 = vector.load %arg3[%c0_3, %c0_4] : memref<1x1xf32, #tpu.memory_space<vmem>>, vector<1x1xf32>
    %4 = vector.broadcast %3 : vector<1x1xf32> to vector<1x2xf32>
    %5 = arith.addf %2, %4 : vector<1x2xf32>
    %c0_5 = arith.constant 0 : index
    %c0_6 = arith.constant 0 : index
    %6 = vector.load %arg4[%c0_5, %c0_6] : memref<1x2xf32, #tpu.memory_space<vmem>>, vector<1x2xf32>
    tpu.vector_store %arg4[%c0_5, %c0_6], %5 {strides = array<i32>} : memref<1x2xf32, #tpu.memory_space<vmem>>, vector<1x2xf32>,
    return
  }
  func.func @transform_0(%arg0: i32) -> (i32, i32) {
    %c0_i32 = arith.constant 0 : i32
    %c0_i32_0 = arith.constant 0 : i32
    return %arg0, %c0_i32 : i32, i32
  }
  func.func @transform_1(%arg0: i32) -> (i32, i32) {
    %c0_i32 = arith.constant 0 : i32
    %c0_i32_0 = arith.constant 0 : i32
    %c0_i32_1 = arith.constant 0 : i32
    return %c0_i32, %c0_i32_0 : i32, i32
  }
  func.func @transform_2(%arg0: i32) -> (i32, i32) {
    %c0_i32 = arith.constant 0 : i32
    %c0_i32_0 = arith.constant 0 : i32
    %c0_i32_1 = arith.constant 0 : i32
    return %c0_i32, %c0_i32_0 : i32, i32
  }
  func.func @transform_3(%arg0: i32) -> (i32, i32) {
    %c0_i32 = arith.constant 0 : i32
    %c0_i32_0 = arith.constant 0 : i32
    return %arg0, %c0_i32 : i32, i32
  }
}

</mosaic_0001>

<llo_original>
// kernel: tpu_custom_call.1
$region0: #{tpu_custom_call.1}
  #allocation0 [shape = 'u32[]', space=smem, size = 0x4, offset = 0x4, fixed_abs, tag = 'smem constant byte address 0x4 - core index']
  #allocation1 [shape = 'u32[72,128]{1,0:T(1,128)}', space=vmem, size = 0x9000, scoped, tag = 'internal scratch']
  #allocation2 [shape = 'f32[1,1]{1,0:T(1,128)S(1)}', space=vmem, size = 0x200, scoped, tag = 'scoped memory for tpu_custom_call.1']
  %s0 = inlined_call_operand.vmem [shape: f32[1,64], index: 0, kind: input, shape index: {}]
  %s1 = inlined_call_operand.vmem [shape: f32[64,2], index: 1, kind: input, shape index: {}]
  %s2 = inlined_call_operand.<no memory space> [shape: f32[1,1], index: 2, kind: input, shape index: {}]
  %s3 = inlined_call_operand.hbm [shape: f32[1,2], index: 3, kind: output, shape index: {}]
  %s4 = sld [smem:[#allocation0]]
  $region22: #{tpu_custom_call.1} parent=0
    _
  %s6 = ssub.s32 1, %s4
  %s7 = scalar_select 0, %s6, %s4
  %v8 = vstv %s2
  %9 = vst [vmem:[#allocation2] sm:$0x1] %v8
  $region1: #{tpu_custom_call.1} parent=0
    #allocation3 [shape = 'u8[512]{0}', space=vmem, size = 0x400, scoped, tag = 'output window, operand 0, single buffered']
    #allocation4 [shape = 's32[1]{0}', space=sflag, size = 0x4, scoped, tag = 'scoped memory for tpu_custom_call.1']
    %10 = vsyncpa [#allocation4], 0
    // Predicated region
    $region2: #{tpu_custom_call.1} parent=1 // pred_check
      _
    $region3: #{tpu_custom_call.1} parent=1 // pred_check_branch
      %12 = sbr.rel (0) target = $region5
    $region4: #{tpu_custom_call.1} parent=1 // pred_region
      _
    $region5: #{tpu_custom_call.1} parent=1 // pred_fallthru
      _
    // Predicated region
    $region6: #{tpu_custom_call.1} parent=1 // pred_check
      _
    $region7: #{tpu_custom_call.1} parent=1 // pred_check_branch
      %14 = sbr.rel (0) target = $region9
    $region8: #{tpu_custom_call.1} parent=1 // pred_region
      _
    $region9: #{tpu_custom_call.1} parent=1 // pred_fallthru
      _
    // Predicated region
    $region10: #{tpu_custom_call.1} parent=1 // pred_check
      _
    $region11: #{tpu_custom_call.1} parent=1 // pred_check_branch
      %16 = sbr.rel (0) target = $region13
    $region12: #{tpu_custom_call.1} parent=1 // pred_region
      _
    $region13: #{tpu_custom_call.1} parent=1 // pred_fallthru
      _
    %v17 = vld [vmem:[%s0] sm:$0x1]
    %v18 = vld [vmem:[%s1] sm:$0xff]
    %v19 = vld [vmem:[%s1 + $0x8] sm:$0xff]
    %v20 = vld [vmem:[%s1 + $0x10] sm:$0xff]
    %v21 = vld [vmem:[%s1 + $0x18] sm:$0xff]
    %v22 = vld [vmem:[%s1 + $0x20] sm:$0xff]
    %v23 = vld [vmem:[%s1 + $0x28] sm:$0xff]
    %v24 = vld [vmem:[%s1 + $0x30] sm:$0xff]
    %v25 = vld [vmem:[%s1 + $0x38] sm:$0xff]
    %v26 = vld [vmem:[#allocation2] sm:$0x1]
    %28 = vset.pattern.permute.xlu0 0
    %29 = vperm.xlu0 %28, %v26
    %v30 = vpop.permute.xlu0 %29
    %v32 = vperm.slane %v30, 0
    %vm33 = vcmask 523264
    %v35 = vsel %vm33, %v17, 0
    %37 = vmatpush.msra.mxu0 0.0
    %38 = vmatpush.msra.mxu0 0.0
    %39 = vmatpush.msra.mxu0 0.0
    %40 = vmatpush.msra.mxu0 0.0
    %41 = vmatpush.msra.mxu0 0.0
    %42 = vmatpush.msra.mxu0 0.0
    %43 = vmatpush.msra.mxu0 0.0
    %44 = vmatpush.msra.mxu0 0.0
    %45 = vmatpush.msra.mxu0 %v25
    %46 = vmatpush.msra.mxu0 %v24
    %47 = vmatpush.msra.mxu0 %v23
    %48 = vmatpush.msra.mxu0 %v22
    %49 = vmatpush.msra.mxu0 %v21
    %50 = vmatpush.msra.mxu0 %v20
    %51 = vmatpush.msra.mxu0 %v19
    %52 = vmatpush.msra.mxu0 %v18
    %53 = vmatmul.f32.gmra.mxu0 %v35
    %v54 = vpop.f32.mrf.mxu0
    %v55 = vadd.f32 %v32, %v54
    %56 = vdwg.mxu0
    %vm57 = vcmask 8192
    %58 = vst.msk [vmem:[#allocation3] sm:$0x1] %vm57, %v55
    // Predicated region
    $region14: #{tpu_custom_call.1} parent=1 // pred_check
      _
    $region15: #{tpu_custom_call.1} parent=1 // pred_check_branch
      %60 = sbr.rel (0) target = $region17
    $region16: #{tpu_custom_call.1} parent=1 // pred_region
      %62 = vsyncadd [#allocation4], 0
      %s64 = sshll.u32 [#allocation3], 4
      %s65 = int_to_ptr.vmem [resolvable:$true] %s64
      %s66 = sshll.u32 %s3, 4
      %s67 = int_to_ptr.hbm [resolvable:$true] %s66
      %69 = dma.vmem_to_hbm [thread:$0]  %s65, 16, %s67, [#allocation4]
    $region17: #{tpu_custom_call.1} parent=1 // pred_fallthru
      _
    // Predicated region
    $region18: #{tpu_custom_call.1} parent=1 // pred_check
      _
    $region19: #{tpu_custom_call.1} parent=1 // pred_check_branch
      %71 = sbr.rel (0) target = $region21
    $region20: #{tpu_custom_call.1} parent=1 // pred_region
      %73 = dma.done [#allocation4], 16
    $region21: #{tpu_custom_call.1} parent=1 // pred_fallthru
      _
    %74 = vsyncpa [#allocation4], 1

</llo_original>
